<compile_context>
chip_gen: v7x
topology: tpu7x:2x2x1
jax: 0.10.0
libtpu: 0.0.40
codegen_flags: <defaults>
</compile_context>

<pallas_src>
import math

import jax
import jax.numpy as jnp
from jax.experimental import pallas as pl
from jax.experimental.pallas import tpu as pltpu


def token_embedding_kernel(x_ref, w_ref, b_ref, o_ref):
    # x_ref: (TM, c_in), w_ref: (c_in, d_pad), b_ref: (1, d_pad) f32, o_ref: (TM, d_pad)
    acc = jnp.dot(x_ref[...], w_ref[...], preferred_element_type=jnp.float32)
    o_ref[...] = (acc + b_ref[...]).astype(o_ref.dtype)


def token_embedding(x, weight, bias, *, tile_m=1024):
    """x: (B, L, c_in); weight: (d_model, c_in, 1); bias: (d_model,) -> (B, L+2, d_model)."""
    B, L, c_in = x.shape
    d_model = weight.shape[0]

    # Circular padding by 1 on each side of the sequence axis. Kept as wrapper glue:
    # the extra pass touches only B*L*c_in elements (c_in << d_model, negligible),
    # whereas wrapping on the output side would re-stream the full d_model-wide slab.
    x_pad = jnp.concatenate([x[:, -1:, :], x, x[:, :1, :]], axis=1)  # (B, L+2, c_in)
    M = B * (L + 2)
    x_flat = x_pad.reshape(M, c_in)

    # Lane-dense output: pad d_model up to a multiple of 128 so stores are
    # unmasked wide vst. No-op (and no extra traffic) when already aligned.
    d_pad = ((d_model + 127) // 128) * 128
    w2d = weight[:, :, 0].T.astype(x.dtype)                 # (c_in, d_model)
    b2d = bias.reshape(1, d_model).astype(jnp.float32)      # bias stays f32
    if d_pad != d_model:
        w2d = jnp.pad(w2d, ((0, 0), (0, d_pad - d_model)))
        b2d = jnp.pad(b2d, ((0, 0), (0, d_pad - d_model)))

    # Row tile: sublane-aligned (multiple of 8), capped so double-buffered
    # input+output tiles (2 * TM * (c_in + d_pad) * bytes) stay well inside the
    # 16 MiB (v5e) / 32 MiB (v6e, v7x) default scoped-VMEM budget.
    tm = min(tile_m, ((M + 7) // 8) * 8)
    tm = max(8, (tm // 8) * 8)
    grid_m = pl.cdiv(M, tm)

    out_flat = pl.pallas_call(
        token_embedding_kernel,
        out_shape=jax.ShapeDtypeStruct((M, d_pad), x.dtype),
        grid_spec=pltpu.PrefetchScalarGridSpec(
            num_scalar_prefetch=0,
            grid=(grid_m,),
            in_specs=[
                pl.BlockSpec((tm, c_in), lambda i: (i, 0)),     # streamed row tiles
                pl.BlockSpec((c_in, d_pad), lambda i: (0, 0)),  # tiny weight, resident
                pl.BlockSpec((1, d_pad), lambda i: (0, 0)),     # f32 bias, resident
            ],
            out_specs=pl.BlockSpec((tm, d_pad), lambda i: (i, 0)),
        ),
        # Row tiles are independent -> "parallel" lets v7x shard across its 2 TCs
        # (neutral on single-TC v5e/v6e).
        compiler_params=pltpu.CompilerParams(
            dimension_semantics=("parallel",)),
    )(x_flat, w2d, b2d)

    if d_pad != d_model:
        out_flat = out_flat[:, :d_model]
    return out_flat.reshape(B, L + 2, d_model)


def init_params(key, c_in, d_model):
    """Deterministic init matching nn.Conv1d + kaiming_normal_(fan_in, leaky_relu)."""
    k_w, k_b = jax.random.split(key)
    fan_in = c_in * 1  # in_channels * kernel_size
    gain = math.sqrt(2.0 / (1.0 + 0.01 ** 2))       # leaky_relu default neg slope
    std = gain / math.sqrt(fan_in)
    weight = std * jax.random.normal(k_w, (d_model, c_in, 1), dtype=jnp.float32)
    bound = 1.0 / math.sqrt(fan_in)                 # default Conv1d bias init
    bias = jax.random.uniform(k_b, (d_model,), minval=-bound, maxval=bound,
                              dtype=jnp.float32)
    return weight, bias


if __name__ == "__main__":
    key = jax.random.PRNGKey(0)
    k_x, k_p = jax.random.split(key)

    B, L, c_in, d_model = 2, 8, 4, 32
    x = jax.random.normal(k_x, (B, L, c_in), dtype=jnp.float32)
    weight, bias = init_params(k_p, c_in, d_model)

    out = token_embedding(x, weight, bias)
    out = jax.block_until_ready(out)

    # Reference check (plain JAX) for the same circular-pad + 1x1 conv semantics.
    x_pad = jnp.concatenate([x[:, -1:, :], x, x[:, :1, :]], axis=1)
    ref = jnp.einsum("blc,dc->bld", x_pad, weight[:, :, 0]) + bias[None, None, :]
    assert out.shape == (B, L + 2, d_model)
    assert jnp.allclose(out, ref, atol=1e-5, rtol=1e-5)

    print("KERNEL_OK")
</pallas_src>

<mosaic_0001>
module attributes {stable_mosaic.version = 11 : i64} {
  func.func @token_embedding_kernel(%arg0: i32, %arg1: memref<24x4xf32, #tpu.memory_space<vmem>>, %arg2: memref<4x128xf32, #tpu.memory_space<vmem>>, %arg3: memref<1x128xf32, #tpu.memory_space<vmem>>, %arg4: memref<24x128xf32, #tpu.memory_space<vmem>>) attributes {dimension_semantics = [#tpu.dimension_semantics<parallel>], iteration_bounds = array<i64: 1>, scalar_prefetch = 0 : i64, scratch_operands = 0 : i64, tpu.core_type = #tpu.core_type<tc>, window_params = [{transform_indices = @transform_0, window_bounds = array<i64: 24, 4>}, {pipeline_mode = #tpu.pipeline_mode<synchronous>, transform_indices = @transform_1, window_bounds = array<i64: 4, 128>}, {pipeline_mode = #tpu.pipeline_mode<synchronous>, transform_indices = @transform_2, window_bounds = array<i64: 1, 128>}, {transform_indices = @transform_3, window_bounds = array<i64: 24, 128>}]} {
    %c0 = arith.constant 0 : index
    %c0_0 = arith.constant 0 : index
    %0 = vector.load %arg1[%c0, %c0_0] : memref<24x4xf32, #tpu.memory_space<vmem>>, vector<24x4xf32>
    %c0_1 = arith.constant 0 : index
    %c0_2 = arith.constant 0 : index
    %1 = vector.load %arg2[%c0_1, %c0_2] : memref<4x128xf32, #tpu.memory_space<vmem>>, vector<4x128xf32>
    %cst = arith.constant dense<0.000000e+00> : vector<24x128xf32>
    %2 = tpu.matmul %0, %1, %cst {dimension_numbers = #tpu.dot_dimension_numbers<[1], [0], [0], [1], [0, 0, 1, 1], [], []>} : vector<24x4xf32>, vector<4x128xf32>, vector<24x128xf32> -> vector<24x128xf32>
    %c0_3 = arith.constant 0 : index
    %c0_4 = arith.constant 0 : index
    %3 = vector.load %arg3[%c0_3, %c0_4] : memref<1x128xf32, #tpu.memory_space<vmem>>, vector<1x128xf32>
    %4 = vector.broadcast %3 : vector<1x128xf32> to vector<24x128xf32>
    %5 = arith.addf %2, %4 : vector<24x128xf32>
    %c0_5 = arith.constant 0 : index
    %c0_6 = arith.constant 0 : index
    %6 = vector.load %arg4[%c0_5, %c0_6] : memref<24x128xf32, #tpu.memory_space<vmem>>, vector<24x128xf32>
    tpu.vector_store %arg4[%c0_5, %c0_6], %5 {strides = array<i32>} : memref<24x128xf32, #tpu.memory_space<vmem>>, vector<24x128xf32>,
    return
  }
  func.func @transform_0(%arg0: i32) -> (i32, i32) {
    %c0_i32 = arith.constant 0 : i32
    %c0_i32_0 = arith.constant 0 : i32
    return %arg0, %c0_i32 : i32, i32
  }
  func.func @transform_1(%arg0: i32) -> (i32, i32) {
    %c0_i32 = arith.constant 0 : i32
    %c0_i32_0 = arith.constant 0 : i32
    %c0_i32_1 = arith.constant 0 : i32
    return %c0_i32, %c0_i32_0 : i32, i32
  }
  func.func @transform_2(%arg0: i32) -> (i32, i32) {
    %c0_i32 = arith.constant 0 : i32
    %c0_i32_0 = arith.constant 0 : i32
    %c0_i32_1 = arith.constant 0 : i32
    return %c0_i32, %c0_i32_0 : i32, i32
  }
  func.func @transform_3(%arg0: i32) -> (i32, i32) {
    %c0_i32 = arith.constant 0 : i32
    %c0_i32_0 = arith.constant 0 : i32
    return %arg0, %c0_i32 : i32, i32
  }
}

</mosaic_0001>

<llo_original>
// kernel: tpu_custom_call.1
$region0: #{tpu_custom_call.1}
  #allocation0 [shape = 'u32[]', space=smem, size = 0x4, offset = 0x4, fixed_abs, tag = 'smem constant byte address 0x4 - core index']
  #allocation1 [shape = 'u32[144,128]{1,0:T(1,128)}', space=vmem, size = 0x12000, scoped, tag = 'internal scratch']
  %s0 = inlined_call_operand.vmem [shape: f32[20,4], index: 0, kind: input, shape index: {}]
  %s1 = inlined_call_operand.vmem [shape: f32[4,128], index: 1, kind: input, shape index: {}]
  %s2 = inlined_call_operand.vmem [shape: f32[1,128], index: 2, kind: input, shape index: {}]
  %s3 = inlined_call_operand.hbm [shape: f32[20,128], index: 3, kind: output, shape index: {}]
  %s4 = sld [smem:[#allocation0]]
  $region22: #{tpu_custom_call.1} parent=0
    _
  %s6 = ssub.s32 1, %s4
  %s7 = scalar_select 0, %s6, %s4
  $region1: #{tpu_custom_call.1} parent=0
    #allocation2 [shape = 'u8[12288]{0}', space=vmem, size = 0x3000, scoped, tag = 'output window, operand 0, single buffered']
    #allocation3 [shape = 's32[1]{0}', space=sflag, size = 0x4, scoped, tag = 'scoped memory for tpu_custom_call.1']
    %8 = vsyncpa [#allocation3], 0
    // Predicated region
    $region2: #{tpu_custom_call.1} parent=1 // pred_check
      _
    $region3: #{tpu_custom_call.1} parent=1 // pred_check_branch
      %10 = sbr.rel (0) target = $region5
    $region4: #{tpu_custom_call.1} parent=1 // pred_region
      _
    $region5: #{tpu_custom_call.1} parent=1 // pred_fallthru
      _
    // Predicated region
    $region6: #{tpu_custom_call.1} parent=1 // pred_check
      _
    $region7: #{tpu_custom_call.1} parent=1 // pred_check_branch
      %12 = sbr.rel (0) target = $region9
    $region8: #{tpu_custom_call.1} parent=1 // pred_region
      _
    $region9: #{tpu_custom_call.1} parent=1 // pred_fallthru
      _
    // Predicated region
    $region10: #{tpu_custom_call.1} parent=1 // pred_check
      _
    $region11: #{tpu_custom_call.1} parent=1 // pred_check_branch
      %14 = sbr.rel (0) target = $region13
    $region12: #{tpu_custom_call.1} parent=1 // pred_region
      _
    $region13: #{tpu_custom_call.1} parent=1 // pred_fallthru
      _
    %v15 = vld [vmem:[%s0] sm:$0xff]
    %v16 = vld [vmem:[%s0 + $0x8] sm:$0xff]
    %v17 = vld [vmem:[%s0 + $0x10] sm:$0xff]
    %v18 = vld [vmem:[%s1] sm:$0xf]
    %v19 = vld [vmem:[%s2] sm:$0x1]
    %v21 = vlaneseq
    %v22 = vshrl.u32 %v21, 7
    %v23 = vsub.s32 0, %v22
    %v24 = vrot.slane %v19, %v23
    %vm26 = vcmask 31744
    %v28 = vsel %vm26, %v15, 0
    %v31 = vsel %vm26, %v16, 0
    %v34 = vsel %vm26, %v17, 0
    %vm36 = vcmask 1043456
    %v38 = vsel %vm36, %v18, 0
    %40 = vmatprep.subr.mxu0 0.0
    %41 = vmatpush1.msra.mxu0 %v38
    %42 = vmatprep.subr.mxu0 0.0
    %43 = vmatpush1.msra.mxu0 0.0
    %44 = vmatprep.subr.mxu0 0.0
    %45 = vmatpush1.msra.mxu0 0.0
    %46 = vmatprep.subr.mxu0 0.0
    %47 = vmatpush1.msra.mxu0 0.0
    %48 = vmatprep.subr.mxu0 0.0
    %49 = vmatpush1.msra.mxu0 0.0
    %50 = vmatprep.subr.mxu0 0.0
    %51 = vmatpush1.msra.mxu0 0.0
    %52 = vmatprep.subr.mxu0 0.0
    %53 = vmatpush1.msra.mxu0 0.0
    %54 = vmatprep.subr.mxu0 0.0
    %55 = vmatpush1.msra.mxu0 0.0
    %56 = vmatprep.subr.mxu0 0.0
    %57 = vmatpush1.msra.mxu0 0.0
    %58 = vmatprep.subr.mxu0 0.0
    %59 = vmatpush1.msra.mxu0 0.0
    %60 = vmatprep.subr.mxu0 0.0
    %61 = vmatpush1.msra.mxu0 0.0
    %62 = vmatprep.subr.mxu0 0.0
    %63 = vmatpush1.msra.mxu0 0.0
    %64 = vmatprep.subr.mxu0 0.0
    %65 = vmatpush1.msra.mxu0 0.0
    %66 = vmatprep.subr.mxu0 0.0
    %67 = vmatpush1.msra.mxu0 0.0
    %68 = vmatprep.subr.mxu0 0.0
    %69 = vmatpush1.msra.mxu0 0.0
    %70 = vmatprep.subr.mxu0 0.0
    %71 = vmatpush1.msra.mxu0 0.0
    %72 = vmatprep.subr.mxu0 0.0
    %73 = vmatpush1.msra.mxu0 0.0
    %74 = vmatprep.subr.mxu0 0.0
    %75 = vmatpush1.msra.mxu0 0.0
    %76 = vmatprep.subr.mxu0 0.0
    %77 = vmatpush1.msra.mxu0 0.0
    %78 = vmatprep.subr.mxu0 0.0
    %79 = vmatpush1.msra.mxu0 0.0
    %80 = vmatprep.subr.mxu0 0.0
    %81 = vmatpush1.msra.mxu0 0.0
    %82 = vmatprep.subr.mxu0 0.0
    %83 = vmatpush1.msra.mxu0 0.0
    %84 = vmatprep.subr.mxu0 0.0
    %85 = vmatpush1.msra.mxu0 0.0
    %86 = vmatprep.subr.mxu0 0.0
    %87 = vmatpush1.msra.mxu0 0.0
    %88 = vmatprep.subr.mxu0 0.0
    %89 = vmatpush1.msra.mxu0 0.0
    %90 = vmatprep.subr.mxu0 0.0
    %91 = vmatpush1.msra.mxu0 0.0
    %92 = vmatprep.subr.mxu0 0.0
    %93 = vmatpush1.msra.mxu0 0.0
    %94 = vmatprep.subr.mxu0 0.0
    %95 = vmatpush1.msra.mxu0 0.0
    %96 = vmatprep.subr.mxu0 0.0
    %97 = vmatpush1.msra.mxu0 0.0
    %98 = vmatprep.subr.mxu0 0.0
    %99 = vmatpush1.msra.mxu0 0.0
    %100 = vmatprep.subr.mxu0 0.0
    %101 = vmatpush1.msra.mxu0 0.0
    %102 = vmatprep.subr.mxu0 0.0
    %103 = vmatpush1.msra.mxu0 0.0
    %104 = vmatprep.mubr.f32.mxu0 0.0
    %105 = vmatmul.mubr.f32.gmra.mrb[0].mxu0 %v28
    %v106 = vpop.f32.mrb[0].mxu0
    %v107 = vadd.f32 %v24, %v106
    %v108 = vpop.f32.mrb[0].mxu0
    %109 = vmatprep.mubr.f32.mxu0 0.0
    %110 = vmatmul.mubr.f32.gmra.mrb[0].mxu0 %v31
    %v111 = vpop.f32.mrb[0].mxu0
    %v112 = vadd.f32 %v24, %v111
    %v113 = vpop.f32.mrb[0].mxu0
    %114 = vmatprep.mubr.f32.mxu0 0.0
    %115 = vmatmul.mubr.f32.gmra.mrb[0].mxu0 %v34
    %v116 = vpop.f32.mrb[0].mxu0
    %v117 = vadd.f32 %v24, %v116
    %v118 = vpop.f32.mrb[0].mxu0
    %119 = vdwg.mxu0
    %120 = vst [vmem:[#allocation2] sm:$0xff] %v107
    %121 = vst [vmem:[#allocation2 + $0x8] sm:$0xff] %v112
    %122 = vst [vmem:[#allocation2 + $0x10] sm:$0xff] %v117
    // Predicated region
    $region14: #{tpu_custom_call.1} parent=1 // pred_check
      _
    $region15: #{tpu_custom_call.1} parent=1 // pred_check_branch
      %124 = sbr.rel (0) target = $region17
    $region16: #{tpu_custom_call.1} parent=1 // pred_region
      %s126 = ssub.s32 384, 384
      %127 = vsyncadd [#allocation3], %s126
      %s128 = sshll.u32 [#allocation2], 4
      %s129 = int_to_ptr.vmem [resolvable:$true] %s128
      %134 = dma.vmem_to_hbm [thread:$0]  %s129, 384, %s3, [#allocation3], 128, 128, 8
    $region17: #{tpu_custom_call.1} parent=1 // pred_fallthru
      _
    // Predicated region
    $region18: #{tpu_custom_call.1} parent=1 // pred_check
      _
    $region19: #{tpu_custom_call.1} parent=1 // pred_check_branch
      %136 = sbr.rel (0) target = $region21
    $region20: #{tpu_custom_call.1} parent=1 // pred_region
      %137 = dma.done [#allocation3], 384
    $region21: #{tpu_custom_call.1} parent=1 // pred_fallthru
      _
    %138 = vsyncpa [#allocation3], 1

</llo_original>
